<compile_context>
chip_gen: v5e
topology: v5e:2x2
jax: 0.10.0
libtpu: 0.0.40
codegen_flags: <defaults>
</compile_context>

<pallas_src>
import jax
import jax.numpy as jnp
from jax.experimental import pallas as pl
from jax.experimental.pallas import tpu as pltpu

LANE = 128
SUBLANE = 8


def _round_up(n, m):
    return ((n + m - 1) // m) * m


def _pad2d(a, rows, cols):
    return jnp.pad(a, ((0, rows - a.shape[0]), (0, cols - a.shape[1])))


def _make_mlp_kernel(n_sub):
    """Kernel factory: n_sub independent sub-tile chains per grid step
    (2 when the tile allows it) so MXU matmuls of one chain can hide the
    VPU bias/ReLU/cast of the other."""

    def kernel(x_ref,
               w0_ref, b0_ref,
               w1_ref, b1_ref,
               w2_ref, b2_ref,
               w3_ref, b3_ref,
               o_ref):
        # Hoist weight/bias loads out of the sub-tile loop (no re-load per chain).
        w0 = w0_ref[...]
        w1 = w1_ref[...]
        w2 = w2_ref[...]
        w3 = w3_ref[...]
        b0 = b0_ref[...]
        b1 = b1_ref[...]
        b2 = b2_ref[...]
        b3 = b3_ref[...]

        tile = o_ref.shape[0]
        sub = tile // n_sub
        for s in range(n_sub):                 # static unroll: independent chains
            rows = pl.ds(s * sub, sub)         # static slice -> zero runtime cost
            # bf16 cast happens in-kernel (VPU filler hidden under MXU/DMA slack).
            xb = x_ref[rows, :].astype(jnp.bfloat16)
            # 4 MXU matmuls, bf16 operands, f32 accumulation; bias/ReLU in f32
            # (v5e-safe: no bf16 VPU there).
            h = jnp.dot(xb, w0, preferred_element_type=jnp.float32) + b0
            h = jnp.maximum(h, 0.0).astype(jnp.bfloat16)
            # Dropout(p=0.2) is identity in eval mode (forward/predict path).
            h = jnp.dot(h, w1, preferred_element_type=jnp.float32) + b1
            h = jnp.maximum(h, 0.0).astype(jnp.bfloat16)
            h = jnp.dot(h, w2, preferred_element_type=jnp.float32) + b2
            h = jnp.maximum(h, 0.0).astype(jnp.bfloat16)
            out = jnp.dot(h, w3, preferred_element_type=jnp.float32) + b3
            o_ref[rows, :] = out.astype(o_ref.dtype)

    return kernel


def prepare_params(params):
    """Cast weights to bf16 (biases stay f32) and zero-pad every output feature
    dim (including the final class dim) up to a multiple of 128 lanes. Zero
    padding propagates exactly through bias-add, ReLU and the next matmul, and
    padded output columns are exactly zero, so results are exact after slicing.
    The lane-dense final dim turns masked vst.msk partial stores into full
    unmasked stores (biggest single measured lever)."""
    (w0, b0), (w1, b1), (w2, b2), (w3, b3) = params
    F = w0.shape[0]
    L0 = _round_up(w0.shape[1], LANE)
    L1 = _round_up(w1.shape[1], LANE)
    L2 = _round_up(w2.shape[1], LANE)
    Cp = _round_up(w3.shape[1], LANE)

    w0p = _pad2d(w0, F,  L0).astype(jnp.bfloat16)
    w1p = _pad2d(w1, L0, L1).astype(jnp.bfloat16)
    w2p = _pad2d(w2, L1, L2).astype(jnp.bfloat16)
    w3p = _pad2d(w3, L2, Cp).astype(jnp.bfloat16)

    b0p = _pad2d(b0, 1, L0).astype(jnp.float32)
    b1p = _pad2d(b1, 1, L1).astype(jnp.float32)
    b2p = _pad2d(b2, 1, L2).astype(jnp.float32)
    b3p = _pad2d(b3, 1, Cp).astype(jnp.float32)

    return [(w0p, b0p), (w1p, b1p), (w2p, b2p), (w3p, b3p)]


def _vmem_limit_and_row_budget(weights_bytes):
    """Scoped-VMEM limit and the byte budget available for batch-tile buffers,
    sized against the actual chip's VMEM (64 MiB/TC on v7x; 128 MiB v5e/v6e)."""
    try:
        info = pltpu.get_tpu_info()
        phys = int(getattr(info, "vmem_capacity_bytes", 64 * 1024 * 1024))
    except Exception:
        phys = 64 * 1024 * 1024            # conservative: v7x per-core VMEM
    limit = min(48 * 1024 * 1024, int(phys * 0.75))
    # Half the limit for tile-dependent buffers (2x safety), minus resident weights.
    budget = max(4 * 1024 * 1024, limit // 2 - weights_bytes)
    return limit, budget


def _per_row_vmem_bytes(F, L0, L1, L2, Cp, out_itemsize):
    row = 2 * F * 4                        # double-buffered f32 x tile
    row += 2 * Cp * out_itemsize           # double-buffered output tile
    row += F * 2                           # in-kernel bf16 cast of x
    row += (L0 + L1 + L2) * (4 + 2)        # f32 h + bf16 cast per hidden layer
    row += Cp * 4                          # final f32 accumulator
    return row


def _choose_batch_tile(B, per_row_bytes, requested, row_budget_bytes):
    max_rows = max(SUBLANE,
                   (row_budget_bytes // max(per_row_bytes, 1)) // SUBLANE * SUBLANE)
    if requested is None:
        target = 1024                      # amortizes ~0.35us/step overhead
        if B >= 4 * target:
            tile = target
        elif B >= 256:
            tile = -(-B // 4)              # ~4 grid steps -> >=2 per v7x TC
        else:
            tile = B                       # tiny batch: one full-batch step
    else:
        tile = requested
    tile = max(SUBLANE, min(tile, B, max_rows))
    align = 16 if tile >= 16 else SUBLANE  # 16 keeps two in-kernel sub-tiles
    return _round_up(tile, align)


def mlp_forward(x, prepared_params, n_classes, *,
                batch_tile=None, out_dtype=jnp.float32):
    """x: [B, F] float32 (cast to bf16 inside the kernel).
    prepared_params: output of prepare_params().  Returns [B, n_classes]."""
    B, F = x.shape
    (w0, _), (w1, _), (w2, _), (w3, _) = prepared_params
    L0, L1, L2, Cp = w0.shape[1], w1.shape[1], w2.shape[1], w3.shape[1]
    assert w0.shape[0] == F

    weights_bytes = 2 * sum(int(w.size) * w.dtype.itemsize +
                            int(b.size) * b.dtype.itemsize
                            for w, b in prepared_params)
    vmem_limit, row_budget = _vmem_limit_and_row_budget(weights_bytes)
    per_row = _per_row_vmem_bytes(F, L0, L1, L2, Cp, jnp.dtype(out_dtype).itemsize)
    tile = _choose_batch_tile(B, per_row, batch_tile, row_budget)
    n_sub = 2 if (tile >= 16 and tile % 16 == 0) else 1

    grid = (pl.cdiv(B, tile),)   # ragged last block: OOB reads are dead rows,
                                 # OOB writes are dropped by Pallas

    def resident(arr):
        # Full-array block, constant index_map: Pallas keeps these tiny
        # operands resident in VMEM and skips re-DMA across grid steps.
        return pl.BlockSpec(arr.shape, lambda i: (0, 0))

    in_specs = [pl.BlockSpec((tile, F), lambda i: (i, 0))]
    args = [x]
    for w, b in prepared_params:
        in_specs += [resident(w), resident(b)]
        args += [w, b]

    out = pl.pallas_call(
        _make_mlp_kernel(n_sub),
        out_shape=jax.ShapeDtypeStruct((B, Cp), out_dtype),
        grid_spec=pl.GridSpec(
            grid=grid,
            in_specs=in_specs,
            out_specs=pl.BlockSpec((tile, Cp), lambda i: (i, 0)),
        ),
        compiler_params=pltpu.CompilerParams(
            dimension_semantics=("parallel",),   # batch steps shard across TCs
            vmem_limit_bytes=int(vmem_limit),
        ),
    )(*args)

    # Drop the lane-padding columns; downstream argmax/softmax must use this view.
    return out[:, :n_classes]


def init_params(key, n_features, n_classes):
    """Deterministic synthetic init (same shapes as the PyTorch module)."""
    layers = [d * n_classes // 10 for d in (128, 64, 32)]
    dims = [n_features] + layers + [n_classes]
    params = []
    for i in range(len(dims) - 1):
        key, kw, kb = jax.random.split(key, 3)
        fan_in, fan_out = dims[i], dims[i + 1]
        bound = 1.0 / (fan_in ** 0.5)  # mimic nn.Linear uniform scale
        w = jax.random.uniform(kw, (fan_in, fan_out), jnp.float32, -bound, bound)
        b = jax.random.uniform(kb, (1, fan_out), jnp.float32, -bound, bound)
        params.append((w, b))
    return params


def mlp_reference(x, prepared_params):
    """Plain-JAX reference with identical numerics (bf16 operands, f32 acc)."""
    h = x.astype(jnp.bfloat16)
    n = len(prepared_params)
    for i, (w, b) in enumerate(prepared_params):
        h = jnp.dot(h, w, preferred_element_type=jnp.float32) + b
        if i < n - 1:
            h = jnp.maximum(h, 0.0).astype(jnp.bfloat16)
    return h


if __name__ == "__main__":
    # Module-consistent shapes: n_features=32, n_classes=10 -> hidden [128,64,32].
    # batch=512 with the adaptive tile -> 4 grid steps of 128 rows: pipelined
    # DMA/compute overlap and >=2 steps per TensorCore on v7x.
    n_features = 32
    n_classes = 10
    batch = 512

    key = jax.random.PRNGKey(0)
    key, kx = jax.random.split(key)
    x = jax.random.normal(kx, (batch, n_features), jnp.float32)

    params = init_params(key, n_features, n_classes)
    prepared = prepare_params(params)

    out = mlp_forward(x, prepared, n_classes)
    out = jax.block_until_ready(out)

    ref = mlp_reference(x, prepared)[:, :n_classes]
    assert out.shape == (batch, n_classes)
    assert jnp.allclose(out, ref, atol=1e-2, rtol=1e-2), "mismatch vs reference"

    # TODO(synk): training-mode Dropout (p=0.2) not implemented; forward/predict
    # use eval semantics where dropout is the identity.
    print("KERNEL_OK")
</pallas_src>

<mosaic_0001>
module attributes {stable_mosaic.version = 11 : i64} {
  func.func @kernel(%arg0: i32, %arg1: memref<128x32xf32, #tpu.memory_space<vmem>>, %arg2: memref<32x128xbf16, #tpu.memory_space<vmem>>, %arg3: memref<1x128xf32, #tpu.memory_space<vmem>>, %arg4: memref<128x128xbf16, #tpu.memory_space<vmem>>, %arg5: memref<1x128xf32, #tpu.memory_space<vmem>>, %arg6: memref<128x128xbf16, #tpu.memory_space<vmem>>, %arg7: memref<1x128xf32, #tpu.memory_space<vmem>>, %arg8: memref<128x128xbf16, #tpu.memory_space<vmem>>, %arg9: memref<1x128xf32, #tpu.memory_space<vmem>>, %arg10: memref<128x128xf32, #tpu.memory_space<vmem>>) attributes {dimension_semantics = [#tpu.dimension_semantics<parallel>], iteration_bounds = array<i64: 4>, scalar_prefetch = 0 : i64, scratch_operands = 0 : i64, tpu.core_type = #tpu.core_type<tc>, window_params = [{transform_indices = @transform_0, window_bounds = array<i64: 128, 32>}, {pipeline_mode = #tpu.pipeline_mode<synchronous>, transform_indices = @transform_1, window_bounds = array<i64: 32, 128>}, {pipeline_mode = #tpu.pipeline_mode<synchronous>, transform_indices = @transform_2, window_bounds = array<i64: 1, 128>}, {pipeline_mode = #tpu.pipeline_mode<synchronous>, transform_indices = @transform_3, window_bounds = array<i64: 128, 128>}, {pipeline_mode = #tpu.pipeline_mode<synchronous>, transform_indices = @transform_4, window_bounds = array<i64: 1, 128>}, {pipeline_mode = #tpu.pipeline_mode<synchronous>, transform_indices = @transform_5, window_bounds = array<i64: 128, 128>}, {pipeline_mode = #tpu.pipeline_mode<synchronous>, transform_indices = @transform_6, window_bounds = array<i64: 1, 128>}, {pipeline_mode = #tpu.pipeline_mode<synchronous>, transform_indices = @transform_7, window_bounds = array<i64: 128, 128>}, {pipeline_mode = #tpu.pipeline_mode<synchronous>, transform_indices = @transform_8, window_bounds = array<i64: 1, 128>}, {transform_indices = @transform_9, window_bounds = array<i64: 128, 128>}]} {
    %c0 = arith.constant 0 : index
    %c0_0 = arith.constant 0 : index
    %0 = vector.load %arg2[%c0, %c0_0] : memref<32x128xbf16, #tpu.memory_space<vmem>>, vector<32x128xbf16>
    %c0_1 = arith.constant 0 : index
    %c0_2 = arith.constant 0 : index
    %1 = vector.load %arg4[%c0_1, %c0_2] : memref<128x128xbf16, #tpu.memory_space<vmem>>, vector<128x128xbf16>
    %c0_3 = arith.constant 0 : index
    %c0_4 = arith.constant 0 : index
    %2 = vector.load %arg6[%c0_3, %c0_4] : memref<128x128xbf16, #tpu.memory_space<vmem>>, vector<128x128xbf16>
    %c0_5 = arith.constant 0 : index
    %c0_6 = arith.constant 0 : index
    %3 = vector.load %arg8[%c0_5, %c0_6] : memref<128x128xbf16, #tpu.memory_space<vmem>>, vector<128x128xbf16>
    %c0_7 = arith.constant 0 : index
    %c0_8 = arith.constant 0 : index
    %4 = vector.load %arg3[%c0_7, %c0_8] : memref<1x128xf32, #tpu.memory_space<vmem>>, vector<1x128xf32>
    %c0_9 = arith.constant 0 : index
    %c0_10 = arith.constant 0 : index
    %5 = vector.load %arg5[%c0_9, %c0_10] : memref<1x128xf32, #tpu.memory_space<vmem>>, vector<1x128xf32>
    %c0_11 = arith.constant 0 : index
    %c0_12 = arith.constant 0 : index
    %6 = vector.load %arg7[%c0_11, %c0_12] : memref<1x128xf32, #tpu.memory_space<vmem>>, vector<1x128xf32>
    %c0_13 = arith.constant 0 : index
    %c0_14 = arith.constant 0 : index
    %7 = vector.load %arg9[%c0_13, %c0_14] : memref<1x128xf32, #tpu.memory_space<vmem>>, vector<1x128xf32>
    %c0_15 = arith.constant 0 : index
    %c0_16 = arith.constant 0 : index
    %8 = vector.load %arg1[%c0_15, %c0_16] : memref<128x32xf32, #tpu.memory_space<vmem>>, vector<64x32xf32>
    %9 = arith.truncf %8 : vector<64x32xf32> to vector<64x32xbf16>
    %cst = arith.constant dense<0.000000e+00> : vector<64x128xf32>
    %10 = tpu.matmul %9, %0, %cst {dimension_numbers = #tpu.dot_dimension_numbers<[1], [0], [0], [1], [0, 0, 1, 1], [], []>} : vector<64x32xbf16>, vector<32x128xbf16>, vector<64x128xf32> -> vector<64x128xf32>
    %11 = vector.broadcast %4 : vector<1x128xf32> to vector<64x128xf32>
    %12 = arith.addf %10, %11 : vector<64x128xf32>
    %cst_17 = arith.constant 0.000000e+00 : f32
    %13 = vector.broadcast %cst_17 : f32 to vector<64x128xf32>
    %14 = arith.maximumf %12, %13 : vector<64x128xf32>
    %15 = arith.truncf %14 : vector<64x128xf32> to vector<64x128xbf16>
    %cst_18 = arith.constant dense<0.000000e+00> : vector<64x128xf32>
    %16 = tpu.matmul %15, %1, %cst_18 {dimension_numbers = #tpu.dot_dimension_numbers<[1], [0], [0], [1], [0, 0, 1, 1], [], []>} : vector<64x128xbf16>, vector<128x128xbf16>, vector<64x128xf32> -> vector<64x128xf32>
    %17 = vector.broadcast %5 : vector<1x128xf32> to vector<64x128xf32>
    %18 = arith.addf %16, %17 : vector<64x128xf32>
    %cst_19 = arith.constant 0.000000e+00 : f32
    %19 = vector.broadcast %cst_19 : f32 to vector<64x128xf32>
    %20 = arith.maximumf %18, %19 : vector<64x128xf32>
    %21 = arith.truncf %20 : vector<64x128xf32> to vector<64x128xbf16>
    %cst_20 = arith.constant dense<0.000000e+00> : vector<64x128xf32>
    %22 = tpu.matmul %21, %2, %cst_20 {dimension_numbers = #tpu.dot_dimension_numbers<[1], [0], [0], [1], [0, 0, 1, 1], [], []>} : vector<64x128xbf16>, vector<128x128xbf16>, vector<64x128xf32> -> vector<64x128xf32>
    %23 = vector.broadcast %6 : vector<1x128xf32> to vector<64x128xf32>
    %24 = arith.addf %22, %23 : vector<64x128xf32>
    %cst_21 = arith.constant 0.000000e+00 : f32
    %25 = vector.broadcast %cst_21 : f32 to vector<64x128xf32>
    %26 = arith.maximumf %24, %25 : vector<64x128xf32>
    %27 = arith.truncf %26 : vector<64x128xf32> to vector<64x128xbf16>
    %cst_22 = arith.constant dense<0.000000e+00> : vector<64x128xf32>
    %28 = tpu.matmul %27, %3, %cst_22 {dimension_numbers = #tpu.dot_dimension_numbers<[1], [0], [0], [1], [0, 0, 1, 1], [], []>} : vector<64x128xbf16>, vector<128x128xbf16>, vector<64x128xf32> -> vector<64x128xf32>
    %29 = vector.broadcast %7 : vector<1x128xf32> to vector<64x128xf32>
    %30 = arith.addf %28, %29 : vector<64x128xf32>
    %c0_23 = arith.constant 0 : index
    %c0_24 = arith.constant 0 : index
    %31 = vector.load %arg10[%c0_23, %c0_24] : memref<128x128xf32, #tpu.memory_space<vmem>>, vector<64x128xf32>
    tpu.vector_store %arg10[%c0_23, %c0_24], %30 {strides = array<i32>} : memref<128x128xf32, #tpu.memory_space<vmem>>, vector<64x128xf32>,
    %c64 = arith.constant 64 : index
    %c0_25 = arith.constant 0 : index
    %32 = vector.load %arg1[%c64, %c0_25] : memref<128x32xf32, #tpu.memory_space<vmem>>, vector<64x32xf32>
    %33 = arith.truncf %32 : vector<64x32xf32> to vector<64x32xbf16>
    %cst_26 = arith.constant dense<0.000000e+00> : vector<64x128xf32>
    %34 = tpu.matmul %33, %0, %cst_26 {dimension_numbers = #tpu.dot_dimension_numbers<[1], [0], [0], [1], [0, 0, 1, 1], [], []>} : vector<64x32xbf16>, vector<32x128xbf16>, vector<64x128xf32> -> vector<64x128xf32>
    %35 = vector.broadcast %4 : vector<1x128xf32> to vector<64x128xf32>
    %36 = arith.addf %34, %35 : vector<64x128xf32>
    %cst_27 = arith.constant 0.000000e+00 : f32
    %37 = vector.broadcast %cst_27 : f32 to vector<64x128xf32>
    %38 = arith.maximumf %36, %37 : vector<64x128xf32>
    %39 = arith.truncf %38 : vector<64x128xf32> to vector<64x128xbf16>
    %cst_28 = arith.constant dense<0.000000e+00> : vector<64x128xf32>
    %40 = tpu.matmul %39, %1, %cst_28 {dimension_numbers = #tpu.dot_dimension_numbers<[1], [0], [0], [1], [0, 0, 1, 1], [], []>} : vector<64x128xbf16>, vector<128x128xbf16>, vector<64x128xf32> -> vector<64x128xf32>
    %41 = vector.broadcast %5 : vector<1x128xf32> to vector<64x128xf32>
    %42 = arith.addf %40, %41 : vector<64x128xf32>
    %cst_29 = arith.constant 0.000000e+00 : f32
    %43 = vector.broadcast %cst_29 : f32 to vector<64x128xf32>
    %44 = arith.maximumf %42, %43 : vector<64x128xf32>
    %45 = arith.truncf %44 : vector<64x128xf32> to vector<64x128xbf16>
    %cst_30 = arith.constant dense<0.000000e+00> : vector<64x128xf32>
    %46 = tpu.matmul %45, %2, %cst_30 {dimension_numbers = #tpu.dot_dimension_numbers<[1], [0], [0], [1], [0, 0, 1, 1], [], []>} : vector<64x128xbf16>, vector<128x128xbf16>, vector<64x128xf32> -> vector<64x128xf32>
    %47 = vector.broadcast %6 : vector<1x128xf32> to vector<64x128xf32>
    %48 = arith.addf %46, %47 : vector<64x128xf32>
    %cst_31 = arith.constant 0.000000e+00 : f32
    %49 = vector.broadcast %cst_31 : f32 to vector<64x128xf32>
    %50 = arith.maximumf %48, %49 : vector<64x128xf32>
    %51 = arith.truncf %50 : vector<64x128xf32> to vector<64x128xbf16>
    %cst_32 = arith.constant dense<0.000000e+00> : vector<64x128xf32>
    %52 = tpu.matmul %51, %3, %cst_32 {dimension_numbers = #tpu.dot_dimension_numbers<[1], [0], [0], [1], [0, 0, 1, 1], [], []>} : vector<64x128xbf16>, vector<128x128xbf16>, vector<64x128xf32> -> vector<64x128xf32>
    %53 = vector.broadcast %7 : vector<1x128xf32> to vector<64x128xf32>
    %54 = arith.addf %52, %53 : vector<64x128xf32>
    %c64_33 = arith.constant 64 : index
    %c0_34 = arith.constant 0 : index
    %55 = vector.load %arg10[%c64_33, %c0_34] : memref<128x128xf32, #tpu.memory_space<vmem>>, vector<64x128xf32>
    tpu.vector_store %arg10[%c64_33, %c0_34], %54 {strides = array<i32>} : memref<128x128xf32, #tpu.memory_space<vmem>>, vector<64x128xf32>,
    return
  }
  func.func @transform_0(%arg0: i32) -> (i32, i32) {
    %c0_i32 = arith.constant 0 : i32
    %c0_i32_0 = arith.constant 0 : i32
    return %arg0, %c0_i32 : i32, i32
  }
  func.func @transform_1(%arg0: i32) -> (i32, i32) {
    %c0_i32 = arith.constant 0 : i32
    %c0_i32_0 = arith.constant 0 : i32
    %c0_i32_1 = arith.constant 0 : i32
    return %c0_i32, %c0_i32_0 : i32, i32
  }
  func.func @transform_2(%arg0: i32) -> (i32, i32) {
    %c0_i32 = arith.constant 0 : i32
    %c0_i32_0 = arith.constant 0 : i32
    %c0_i32_1 = arith.constant 0 : i32
    return %c0_i32, %c0_i32_0 : i32, i32
  }
  func.func @transform_3(%arg0: i32) -> (i32, i32) {
    %c0_i32 = arith.constant 0 : i32
    %c0_i32_0 = arith.constant 0 : i32
    %c0_i32_1 = arith.constant 0 : i32
    return %c0_i32, %c0_i32_0 : i32, i32
  }
  func.func @transform_4(%arg0: i32) -> (i32, i32) {
    %c0_i32 = arith.constant 0 : i32
    %c0_i32_0 = arith.constant 0 : i32
    %c0_i32_1 = arith.constant 0 : i32
    return %c0_i32, %c0_i32_0 : i32, i32
  }
  func.func @transform_5(%arg0: i32) -> (i32, i32) {
    %c0_i32 = arith.constant 0 : i32
    %c0_i32_0 = arith.constant 0 : i32
    %c0_i32_1 = arith.constant 0 : i32
    return %c0_i32, %c0_i32_0 : i32, i32
  }
  func.func @transform_6(%arg0: i32) -> (i32, i32) {
    %c0_i32 = arith.constant 0 : i32
    %c0_i32_0 = arith.constant 0 : i32
    %c0_i32_1 = arith.constant 0 : i32
    return %c0_i32, %c0_i32_0 : i32, i32
  }
  func.func @transform_7(%arg0: i32) -> (i32, i32) {
    %c0_i32 = arith.constant 0 : i32
    %c0_i32_0 = arith.constant 0 : i32
    %c0_i32_1 = arith.constant 0 : i32
    return %c0_i32, %c0_i32_0 : i32, i32
  }
  func.func @transform_8(%arg0: i32) -> (i32, i32) {
    %c0_i32 = arith.constant 0 : i32
    %c0_i32_0 = arith.constant 0 : i32
    %c0_i32_1 = arith.constant 0 : i32
    return %c0_i32, %c0_i32_0 : i32, i32
  }
  func.func @transform_9(%arg0: i32) -> (i32, i32) {
    %c0_i32 = arith.constant 0 : i32
    %c0_i32_0 = arith.constant 0 : i32
    return %arg0, %c0_i32 : i32, i32
  }
}

</mosaic_0001>

<llo_original>
// kernel: tpu_custom_call.1
$region0: #{tpu_custom_call.1}
  #allocation0 [shape = 'u32[]', space=smem, size = 0x4, offset = 0x4, fixed_abs, tag = 'smem constant byte address 0x4 - core index']
  #allocation1 [shape = 'u32[72,128]{1,0:T(1,128)}', space=vmem, size = 0x9000, scoped, tag = 'internal scratch']
  %s0 = inlined_call_operand.vmem [shape: f32[512,32], index: 0, kind: input, shape index: {}]
  %s1 = inlined_call_operand.vmem [shape: bf16[32,128], index: 1, kind: input, shape index: {}]
  %s2 = inlined_call_operand.vmem [shape: f32[1,128], index: 2, kind: input, shape index: {}]
  %s3 = inlined_call_operand.vmem [shape: bf16[128,128], index: 3, kind: input, shape index: {}]
  %s4 = inlined_call_operand.vmem [shape: f32[1,128], index: 4, kind: input, shape index: {}]
  %s5 = inlined_call_operand.vmem [shape: bf16[128,128], index: 5, kind: input, shape index: {}]
  %s6 = inlined_call_operand.vmem [shape: f32[1,128], index: 6, kind: input, shape index: {}]
  %s7 = inlined_call_operand.vmem [shape: bf16[128,128], index: 7, kind: input, shape index: {}]
  %s8 = inlined_call_operand.vmem [shape: f32[1,128], index: 8, kind: input, shape index: {}]
  %s9 = inlined_call_operand.hbm [shape: f32[512,128], index: 9, kind: output, shape index: {}]
  %s10 = sld [smem:[#allocation0]]
  $region69: #{tpu_custom_call.1} parent=0
    _
  %s12 = ssub.s32 1, %s10
  %s13 = scalar_select 0, %s12, %s10
  $region1: #{tpu_custom_call.1} parent=0
    #allocation2 [shape = 'u8[131072]{0}', space=vmem, size = 0x20000, scoped, tag = 'output window, operand 0']
    #allocation3 [shape = 's32[2]{0}', space=sflag, size = 0x8, scoped, tag = 'scoped memory for tpu_custom_call.1']
    %14 = vsyncpa [#allocation3], 0
    %s15 = scalar_lea.sflag [#allocation3], 1
    %16 = vsyncpa %s15, 0
    loop: start=0, step=1, limit=6
    $region2: #{tpu_custom_call.1} parent=1 // loop_pre_header
      _
    $region3: #{tpu_custom_call.1} parent=1 // loop_header
      %s18 = sphi 0, %s22
      %p19 = scmp.ge.s32.totalorder %s18, 6
      %s28 = sphi 0, %s30
      %s31 = sphi 0, %s28
      %s32 = sphi 0, %s31
      %s48 = sphi 0, %s32
      %s52 = sphi 0, %s52
      %s54 = sphi 0, %s52
      %s55 = sphi 0, %s54
      %s69 = sphi 0, %s55
      %s73 = sphi 0, %s73
      %s75 = sphi 0, %s73
      %s76 = sphi 0, %s75
      %s90 = sphi 0, %s76
      %s94 = sphi 0, %s94
      %s96 = sphi 0, %s94
      %s97 = sphi 0, %s96
      %s111 = sphi 0, %s97
      %s115 = sphi 0, %s115
      %s117 = sphi 0, %s115
      %s118 = sphi 0, %s117
      %s132 = sphi 0, %s118
      %s136 = sphi 0, %s136
      %s138 = sphi 0, %s136
      %s139 = sphi 0, %s138
      %s153 = sphi 0, %s139
      %s157 = sphi 0, %s157
      %s159 = sphi 0, %s157
      %s160 = sphi 0, %s159
      %s174 = sphi 0, %s160
      %s178 = sphi 0, %s178
      %s180 = sphi 0, %s178
      %s181 = sphi 0, %s180
      %s195 = sphi 0, %s181
      %s199 = sphi 0, %s199
      %s201 = sphi 0, %s199
      %s202 = sphi 0, %s201
      %s216 = sphi 0, %s202
      %s222 = sphi 0, %s224
      %s225 = sphi 0, %s222
      %s226 = sphi 0, %s225
      %s242 = sphi 0, %s226
    $region4: #{tpu_custom_call.1} parent=1 // loop_header_branch
      %21 = sbr.rel (%p19) target = $region8
    $region5: #{tpu_custom_call.1} parent=1 // loop_body
      %s23 = ssub.s32 %s18, 1
      %s24 = ssub.s32 %s18, 2
      %s25 = sadd.s32 %s18, 1
      %s26 = ssub.s32 %s18, %s25
      %p27 = scmp.eq.s32.totalorder %s26, 0
      %s29 = sadd.s32 %s28, 1
      %s30 = scalar_select %p27, %s28, %s29
      %p33 = pneg %p27
      %p34 = scmp.eq.s32.totalorder %s18, 3
      %p35 = por %p33, %p34
      %p36 = scmp.ne.s32.totalorder %s28, %s31
      %p37 = scmp.eq.s32.totalorder %s18, 0
      %p38 = por %p36, %p37
      %p39 = scmp.ne.s32.totalorder %s28, %s31
      %p40 = scmp.eq.s32.totalorder %s23, 3
      %p41 = por %p39, %p40
      %p42 = scmp.ne.s32.totalorder %s31, %s32
      %p43 = scmp.eq.s32.totalorder %s23, 0
      %p44 = por %p42, %p43
      %p45 = scmp.ne.s32.totalorder %s31, %s32
      %p46 = scmp.eq.s32.totalorder %s24, 3
      %p47 = por %p45, %p46
      %p49 = scmp.ne.s32.totalorder %s32, %s48
      %p50 = scmp.eq.s32.totalorder %s24, 0
      %p51 = por %p49, %p50
      %s53 = sadd.s32 %s52, 1
      %p56 = scmp.eq.s32.totalorder %s18, 3
      %p57 = scmp.ne.s32.totalorder %s52, %s54
      %p58 = scmp.eq.s32.totalorder %s18, 0
      %p59 = por %p57, %p58
      %p60 = scmp.ne.s32.totalorder %s52, %s54
      %p61 = scmp.eq.s32.totalorder %s23, 3
      %p62 = por %p60, %p61
      %p63 = scmp.ne.s32.totalorder %s54, %s55
      %p64 = scmp.eq.s32.totalorder %s23, 0
      %p65 = por %p63, %p64
      %p66 = scmp.ne.s32.totalorder %s54, %s55
      %p67 = scmp.eq.s32.totalorder %s24, 3
      %p68 = por %p66, %p67
      %p70 = scmp.ne.s32.totalorder %s55, %s69
      %p71 = scmp.eq.s32.totalorder %s24, 0
      %p72 = por %p70, %p71
      %s74 = sadd.s32 %s73, 1
      %p77 = scmp.eq.s32.totalorder %s18, 3
      %p78 = scmp.ne.s32.totalorder %s73, %s75
      %p79 = scmp.eq.s32.totalorder %s18, 0
      %p80 = por %p78, %p79
      %p81 = scmp.ne.s32.totalorder %s73, %s75
      %p82 = scmp.eq.s32.totalorder %s23, 3
      %p83 = por %p81, %p82
      %p84 = scmp.ne.s32.totalorder %s75, %s76
      %p85 = scmp.eq.s32.totalorder %s23, 0
      %p86 = por %p84, %p85
      %p87 = scmp.ne.s32.totalorder %s75, %s76
      %p88 = scmp.eq.s32.totalorder %s24, 3
      %p89 = por %p87, %p88
      %p91 = scmp.ne.s32.totalorder %s76, %s90
      %p92 = scmp.eq.s32.totalorder %s24, 0
      %p93 = por %p91, %p92
      %s95 = sadd.s32 %s94, 1
      %p98 = scmp.eq.s32.totalorder %s18, 3
      %p99 = scmp.ne.s32.totalorder %s94, %s96
      %p100 = scmp.eq.s32.totalorder %s18, 0
      %p101 = por %p99, %p100
      %p102 = scmp.ne.s32.totalorder %s94, %s96
      %p103 = scmp.eq.s32.totalorder %s23, 3
      %p104 = por %p102, %p103
      %p105 = scmp.ne.s32.totalorder %s96, %s97
      %p106 = scmp.eq.s32.totalorder %s23, 0
      %p107 = por %p105, %p106
      %p108 = scmp.ne.s32.totalorder %s96, %s97
      %p109 = scmp.eq.s32.totalorder %s24, 3
      %p110 = por %p108, %p109
      %p112 = scmp.ne.s32.totalorder %s97, %s111
      %p113 = scmp.eq.s32.totalorder %s24, 0
      %p114 = por %p112, %p113
      %s116 = sadd.s32 %s115, 1
      %p119 = scmp.eq.s32.totalorder %s18, 3
      %p120 = scmp.ne.s32.totalorder %s115, %s117
      %p121 = scmp.eq.s32.totalorder %s18, 0
      %p122 = por %p120, %p121
      %p123 = scmp.ne.s32.totalorder %s115, %s117
      %p124 = scmp.eq.s32.totalorder %s23, 3
      %p125 = por %p123, %p124
      %p126 = scmp.ne.s32.totalorder %s117, %s118
      %p127 = scmp.eq.s32.totalorder %s23, 0
      %p128 = por %p126, %p127
      %p129 = scmp.ne.s32.totalorder %s117, %s118
      %p130 = scmp.eq.s32.totalorder %s24, 3
      %p131 = por %p129, %p130
      %p133 = scmp.ne.s32.totalorder %s118, %s132
      %p134 = scmp.eq.s32.totalorder %s24, 0
      %p135 = por %p133, %p134
      %s137 = sadd.s32 %s136, 1
      %p140 = scmp.eq.s32.totalorder %s18, 3
      %p141 = scmp.ne.s32.totalorder %s136, %s138
      %p142 = scmp.eq.s32.totalorder %s18, 0
      %p143 = por %p141, %p142
      %p144 = scmp.ne.s32.totalorder %s136, %s138
      %p145 = scmp.eq.s32.totalorder %s23, 3
      %p146 = por %p144, %p145
      %p147 = scmp.ne.s32.totalorder %s138, %s139
      %p148 = scmp.eq.s32.totalorder %s23, 0
      %p149 = por %p147, %p148
      %p150 = scmp.ne.s32.totalorder %s138, %s139
      %p151 = scmp.eq.s32.totalorder %s24, 3
      %p152 = por %p150, %p151
      %p154 = scmp.ne.s32.totalorder %s139, %s153
      %p155 = scmp.eq.s32.totalorder %s24, 0
      %p156 = por %p154, %p155
      %s158 = sadd.s32 %s157, 1
      %p161 = scmp.eq.s32.totalorder %s18, 3
      %p162 = scmp.ne.s32.totalorder %s157, %s159
      %p163 = scmp.eq.s32.totalorder %s18, 0
      %p164 = por %p162, %p163
      %p165 = scmp.ne.s32.totalorder %s157, %s159
      %p166 = scmp.eq.s32.totalorder %s23, 3
      %p167 = por %p165, %p166
      %p168 = scmp.ne.s32.totalorder %s159, %s160
      %p169 = scmp.eq.s32.totalorder %s23, 0
      %p170 = por %p168, %p169
      %p171 = scmp.ne.s32.totalorder %s159, %s160
      %p172 = scmp.eq.s32.totalorder %s24, 3
      %p173 = por %p171, %p172
      %p175 = scmp.ne.s32.totalorder %s160, %s174
      %p176 = scmp.eq.s32.totalorder %s24, 0
      %p177 = por %p175, %p176
      %s179 = sadd.s32 %s178, 1
      %p182 = scmp.eq.s32.totalorder %s18, 3
      %p183 = scmp.ne.s32.totalorder %s178, %s180
      %p184 = scmp.eq.s32.totalorder %s18, 0
      %p185 = por %p183, %p184
      %p186 = scmp.ne.s32.totalorder %s178, %s180
      %p187 = scmp.eq.s32.totalorder %s23, 3
      %p188 = por %p186, %p187
      %p189 = scmp.ne.s32.totalorder %s180, %s181
      %p190 = scmp.eq.s32.totalorder %s23, 0
      %p191 = por %p189, %p190
      %p192 = scmp.ne.s32.totalorder %s180, %s181
      %p193 = scmp.eq.s32.totalorder %s24, 3
      %p194 = por %p192, %p193
      %p196 = scmp.ne.s32.totalorder %s181, %s195
      %p197 = scmp.eq.s32.totalorder %s24, 0
      %p198 = por %p196, %p197
      %s200 = sadd.s32 %s199, 1
      %p203 = scmp.eq.s32.totalorder %s18, 3
      %p204 = scmp.ne.s32.totalorder %s199, %s201
      %p205 = scmp.eq.s32.totalorder %s18, 0
      %p206 = por %p204, %p205
      %p207 = scmp.ne.s32.totalorder %s199, %s201
      %p208 = scmp.eq.s32.totalorder %s23, 3
      %p209 = por %p207, %p208
      %p210 = scmp.ne.s32.totalorder %s201, %s202
      %p211 = scmp.eq.s32.totalorder %s23, 0
      %p212 = por %p210, %p211
      %p213 = scmp.ne.s32.totalorder %s201, %s202
      %p214 = scmp.eq.s32.totalorder %s24, 3
      %p215 = por %p213, %p214
      %p217 = scmp.ne.s32.totalorder %s202, %s216
      %p218 = scmp.eq.s32.totalorder %s24, 0
      %p219 = por %p217, %p218
      %s220 = ssub.s32 %s18, %s25
      %p221 = scmp.eq.s32.totalorder %s220, 0
      %s223 = sadd.s32 %s222, 1
      %s224 = scalar_select %p221, %s222, %s223
      %p227 = pneg %p221
      %p228 = scmp.eq.s32.totalorder %s18, 3
      %p229 = por %p227, %p228
      %p230 = scmp.ne.s32.totalorder %s222, %s225
      %p231 = scmp.eq.s32.totalorder %s18, 0
      %p232 = por %p230, %p231
      %p233 = scmp.ne.s32.totalorder %s222, %s225
      %p234 = scmp.eq.s32.totalorder %s23, 3
      %p235 = por %p233, %p234
      %p236 = scmp.ne.s32.totalorder %s225, %s226
      %p237 = scmp.eq.s32.totalorder %s23, 0
      %p238 = por %p236, %p237
      %p239 = scmp.ne.s32.totalorder %s225, %s226
      %p240 = scmp.eq.s32.totalorder %s24, 3
      %p241 = por %p239, %p240
      %p243 = scmp.ne.s32.totalorder %s226, %s242
      %p244 = scmp.eq.s32.totalorder %s24, 0
      %p245 = por %p243, %p244
      %p246 = scmp.le.s32.totalorder 1, %s18
      %p247 = scmp.lt.s32.totalorder %s18, 5
      %p248 = pnand %p246, %p247
      %p249 = pneg %p248
      // Predicated region
      $region9: #{tpu_custom_call.1} parent=5 // pred_check
        _
      $region10: #{tpu_custom_call.1} parent=5 // pred_check_branch
        %251 = sbr.rel (%p248) target = $region12
      $region11: #{tpu_custom_call.1} parent=5 // pred_region
        %s252 = ssub.s32 %s18, 1
        // Predicated region
        $region13: #{tpu_custom_call.1} parent=11 // pred_check
          %p253 = pneg %p65
        $region14: #{tpu_custom_call.1} parent=11 // pred_check_branch
          %255 = sbr.rel (%p253) target = $region16
        $region15: #{tpu_custom_call.1} parent=11 // pred_region
          _
        $region16: #{tpu_custom_call.1} parent=11 // pred_fallthru
          _
        // Predicated region
        $region17: #{tpu_custom_call.1} parent=11 // pred_check
          %p256 = pneg %p86
        $region18: #{tpu_custom_call.1} parent=11 // pred_check_branch
          %258 = sbr.rel (%p256) target = $region20
        $region19: #{tpu_custom_call.1} parent=11 // pred_region
          _
        $region20: #{tpu_custom_call.1} parent=11 // pred_fallthru
          _
        // Predicated region
        $region21: #{tpu_custom_call.1} parent=11 // pred_check
          %p259 = pneg %p107
        $region22: #{tpu_custom_call.1} parent=11 // pred_check_branch
          %261 = sbr.rel (%p259) target = $region24
        $region23: #{tpu_custom_call.1} parent=11 // pred_region
          _
        $region24: #{tpu_custom_call.1} parent=11 // pred_fallthru
          _
        // Predicated region
        $region25: #{tpu_custom_call.1} parent=11 // pred_check
          %p262 = pneg %p128
        $region26: #{tpu_custom_call.1} parent=11 // pred_check_branch
          %264 = sbr.rel (%p262) target = $region28
        $region27: #{tpu_custom_call.1} parent=11 // pred_region
          _
        $region28: #{tpu_custom_call.1} parent=11 // pred_fallthru
          _
        // Predicated region
        $region29: #{tpu_custom_call.1} parent=11 // pred_check
          %p265 = pneg %p149
        $region30: #{tpu_custom_call.1} parent=11 // pred_check_branch
          %267 = sbr.rel (%p265) target = $region32
        $region31: #{tpu_custom_call.1} parent=11 // pred_region
          _
        $region32: #{tpu_custom_call.1} parent=11 // pred_fallthru
          _
        // Predicated region
        $region33: #{tpu_custom_call.1} parent=11 // pred_check
          %p268 = pneg %p170
        $region34: #{tpu_custom_call.1} parent=11 // pred_check_branch
          %270 = sbr.rel (%p268) target = $region36
        $region35: #{tpu_custom_call.1} parent=11 // pred_region
          _
        $region36: #{tpu_custom_call.1} parent=11 // pred_fallthru
          _
        // Predicated region
        $region37: #{tpu_custom_call.1} parent=11 // pred_check
          %p271 = pneg %p191
        $region38: #{tpu_custom_call.1} parent=11 // pred_check_branch
          %273 = sbr.rel (%p271) target = $region40
        $region39: #{tpu_custom_call.1} parent=11 // pred_region
          _
        $region40: #{tpu_custom_call.1} parent=11 // pred_fallthru
          _
        // Predicated region
        $region41: #{tpu_custom_call.1} parent=11 // pred_check
          %p274 = pneg %p212
        $region42: #{tpu_custom_call.1} parent=11 // pred_check_branch
          %276 = sbr.rel (%p274) target = $region44
        $region43: #{tpu_custom_call.1} parent=11 // pred_region
          _
        $region44: #{tpu_custom_call.1} parent=11 // pred_fallthru
          _
      $region12: #{tpu_custom_call.1} parent=5 // pred_fallthru
        _
      %p277 = scmp.lt.s32.totalorder %s18, 4
      // Predicated region
      $region45: #{tpu_custom_call.1} parent=5 // pred_check
        %p278 = pneg %p277
      $region46: #{tpu_custom_call.1} parent=5 // pred_check_branch
        %280 = sbr.rel (%p278) target = $region48
      $region47: #{tpu_custom_call.1} parent=5 // pred_region
        // Predicated region
        $region49: #{tpu_custom_call.1} parent=47 // pred_check
          %p281 = pneg %p38
        $region50: #{tpu_custom_call.1} parent=47 // pred_check_branch
          %283 = sbr.rel (%p281) target = $region52
        $region51: #{tpu_custom_call.1} parent=47 // pred_region
          %s284 = smul.u32 16, %s18
          %p285 = scmp.lt.s32.totalorder %s284, 63
          %s286 = scalar_select %p285, %s284, 63
          %s287 = smul.addr %s286, 8
          %s288 = scalar_lea.vmem %s0, %s287
          %s289 = smul.u32 16, %s18
        $region52: #{tpu_custom_call.1} parent=47 // pred_fallthru
          _
      $region48: #{tpu_custom_call.1} parent=5 // pred_fallthru
        _
      %p290 = scmp.le.s32.totalorder 1, %s18
      %p291 = scmp.lt.s32.totalorder %s18, 5
      %p292 = pnand %p290, %p291
      %p293 = pneg %p292
      // Predicated region
      $region53: #{tpu_custom_call.1} parent=5 // pred_check
        _
      $region54: #{tpu_custom_call.1} parent=5 // pred_check_branch
        %295 = sbr.rel (%p292) target = $region56
      $region55: #{tpu_custom_call.1} parent=5 // pred_region
        %s296 = ssub.s32 %s18, 1
        %s297 = smul.u32 16, %s23
        %p298 = scmp.lt.s32.totalorder %s297, 63
        %s299 = scalar_select %p298, %s297, 63
        %s300 = smul.addr %s299, 8
        %s301 = scalar_lea.vmem %s0, %s300
        %p302 = pneg %p44
        %p303 = pneg %p41
        %p304 = pneg %p65
        %p305 = pneg %p62
        %p306 = pneg %p86
        %p307 = pneg %p83
        %p308 = pneg %p107
        %p309 = pneg %p104
        %p310 = pneg %p128
        %p311 = pneg %p125
        %p312 = pneg %p149
        %p313 = pneg %p146
        %p314 = pneg %p170
        %p315 = pneg %p167
        %p316 = pneg %p191
        %p317 = pneg %p188
        %p318 = pneg %p212
        %p319 = pneg %p209
        %p320 = pneg %p238
        %p321 = pneg %p235
        %s322 = sand.u32 %s225, 1
        %s323 = scalar_lea.sflag [#allocation3], %s322
        %s324 = sand.u32 %s225, 1
        %s325 = smul.addr %s324, 128
        %s326 = scalar_lea.vmem [#allocation2], %s325
        %s327 = smul.u32 16, %s23
        %p328 = scmp.lt.s32.totalorder %s327, 63
        %s329 = scalar_select %p328, %s327, 63
        %s330 = smul.addr %s329, 8
        %s331 = scalar_lea.vmem %s0, %s330
        %s332 = smul.u32 16, %s23
        %s333 = smul.u32 16, %s23
        %v335 = vld [vmem:[%s1] sm:$0xf]
        %v336 = vld [vmem:[%s1 + $0x4] sm:$0xf]
        %v337 = vld [vmem:[%s1 + $0x8] sm:$0xf]
        %v338 = vld [vmem:[%s1 + $0xc] sm:$0xf]
        %v339 = vld [vmem:[%s3] sm:$0xf]
        %v340 = vld [vmem:[%s3 + $0x4] sm:$0xf]
        %v341 = vld [vmem:[%s3 + $0x8] sm:$0xf]
        %v342 = vld [vmem:[%s3 + $0xc] sm:$0xf]
        %v343 = vld [vmem:[%s3 + $0x10] sm:$0xf]
        %v344 = vld [vmem:[%s3 + $0x14] sm:$0xf]
        %v345 = vld [vmem:[%s3 + $0x18] sm:$0xf]
        %v346 = vld [vmem:[%s3 + $0x1c] sm:$0xf]
        %v347 = vld [vmem:[%s3 + $0x20] sm:$0xf]
        %v348 = vld [vmem:[%s3 + $0x24] sm:$0xf]
        %v349 = vld [vmem:[%s3 + $0x28] sm:$0xf]
        %v350 = vld [vmem:[%s3 + $0x2c] sm:$0xf]
        %v351 = vld [vmem:[%s3 + $0x30] sm:$0xf]
        %v352 = vld [vmem:[%s3 + $0x34] sm:$0xf]
        %v353 = vld [vmem:[%s3 + $0x38] sm:$0xf]
        %v354 = vld [vmem:[%s3 + $0x3c] sm:$0xf]
        %v355 = vld [vmem:[%s5] sm:$0xf]
        %v356 = vld [vmem:[%s5 + $0x4] sm:$0xf]
        %v357 = vld [vmem:[%s5 + $0x8] sm:$0xf]
        %v358 = vld [vmem:[%s5 + $0xc] sm:$0xf]
        %v359 = vld [vmem:[%s5 + $0x10] sm:$0xf]
        %v360 = vld [vmem:[%s5 + $0x14] sm:$0xf]
        %v361 = vld [vmem:[%s5 + $0x18] sm:$0xf]
        %v362 = vld [vmem:[%s5 + $0x1c] sm:$0xf]
        %v363 = vld [vmem:[%s5 + $0x20] sm:$0xf]
        %v364 = vld [vmem:[%s5 + $0x24] sm:$0xf]
        %v365 = vld [vmem:[%s5 + $0x28] sm:$0xf]
        %v366 = vld [vmem:[%s5 + $0x2c] sm:$0xf]
        %v367 = vld [vmem:[%s5 + $0x30] sm:$0xf]
        %v368 = vld [vmem:[%s5 + $0x34] sm:$0xf]
        %v369 = vld [vmem:[%s5 + $0x38] sm:$0xf]
        %v370 = vld [vmem:[%s5 + $0x3c] sm:$0xf]
        %v371 = vld [vmem:[%s7] sm:$0xf]
        %v372 = vld [vmem:[%s7 + $0x4] sm:$0xf]
        %v373 = vld [vmem:[%s7 + $0x8] sm:$0xf]
        %v374 = vld [vmem:[%s7 + $0xc] sm:$0xf]
        %v375 = vld [vmem:[%s7 + $0x10] sm:$0xf]
        %v376 = vld [vmem:[%s7 + $0x14] sm:$0xf]
        %v377 = vld [vmem:[%s7 + $0x18] sm:$0xf]
        %v378 = vld [vmem:[%s7 + $0x1c] sm:$0xf]
        %v379 = vld [vmem:[%s7 + $0x20] sm:$0xf]
        %v380 = vld [vmem:[%s7 + $0x24] sm:$0xf]
        %v381 = vld [vmem:[%s7 + $0x28] sm:$0xf]
        %v382 = vld [vmem:[%s7 + $0x2c] sm:$0xf]
        %v383 = vld [vmem:[%s7 + $0x30] sm:$0xf]
        %v384 = vld [vmem:[%s7 + $0x34] sm:$0xf]
        %v385 = vld [vmem:[%s7 + $0x38] sm:$0xf]
        %v386 = vld [vmem:[%s7 + $0x3c] sm:$0xf]
        %v387 = vld [vmem:[%s2] sm:$0x1]
        %v388 = vld [vmem:[%s4] sm:$0x1]
        %v389 = vld [vmem:[%s6] sm:$0x1]
        %v390 = vld [vmem:[%s8] sm:$0x1]
        %v391 = vld [vmem:[%s331] sm:$0xff]
        %v392 = vld [vmem:[%s331 + $0x8] sm:$0xff]
        %v393 = vld [vmem:[%s331 + $0x10] sm:$0xff]
        %v394 = vld [vmem:[%s331 + $0x18] sm:$0xff]
        %v395 = vld [vmem:[%s331 + $0x20] sm:$0xff]
        %v396 = vld [vmem:[%s331 + $0x28] sm:$0xff]
        %v397 = vld [vmem:[%s331 + $0x30] sm:$0xff]
        %v398 = vld [vmem:[%s331 + $0x38] sm:$0xff]
        %v399 = vpack.c.bf16 %v392, %v391
        %v400 = vpack.c.bf16 %v394, %v393
        %v401 = vpack.c.bf16 %v396, %v395
        %v402 = vpack.c.bf16 %v398, %v397
        %v404 = vperm.slane %v387, 0
        %v410 = vunpack.c.l.b16 %v335
        %v411 = vunpack.c.l.b16 %v336
        %v412 = vunpack.c.l.b16 %v337
        %v413 = vunpack.c.l.b16 %v338
        %v414 = vpack.c.b16 %v411, %v410
        %v415 = vpack.c.b16 %v413, %v412
        %vm418 = vcmask 261120
        %v420 = vsel %vm418, %v399, 0
        %v423 = vsel %vm418, %v400, 0
        %v426 = vsel %vm418, %v401, 0
        %v429 = vsel %vm418, %v402, 0
        %431 = vmatpush.bf16.msra.mxu0 0
        %432 = vmatpush.bf16.msra.mxu0 0
        %433 = vmatpush.bf16.msra.mxu0 0
        %434 = vmatpush.bf16.msra.mxu0 0
        %435 = vmatpush.bf16.msra.mxu0 0
        %436 = vmatpush.bf16.msra.mxu0 0
        %437 = vmatpush.bf16.msra.mxu0 %v415
        %438 = vmatpush.bf16.msra.mxu0 %v414
        %439 = vmatmul.bf16.gmra.mxu0 %v420
        %v440 = vpop.f32.mrf.mxu0
        %v441 = vadd.f32 %v404, %v440
        %v442 = vpop.f32.mrf.mxu0
        %v443 = vadd.f32 %v404, %v442
        %444 = vmatmul.bf16.gmra.mxu0 %v423
        %v445 = vpop.f32.mrf.mxu0
        %v446 = vadd.f32 %v404, %v445
        %v447 = vpop.f32.mrf.mxu0
        %v448 = vadd.f32 %v404, %v447
        %449 = vmatmul.bf16.gmra.mxu0 %v426
        %v450 = vpop.f32.mrf.mxu0
        %v451 = vadd.f32 %v404, %v450
        %v452 = vpop.f32.mrf.mxu0
        %v453 = vadd.f32 %v404, %v452
        %454 = vmatmul.bf16.gmra.mxu0 %v429
        %v455 = vpop.f32.mrf.mxu0
        %v456 = vadd.f32 %v404, %v455
        %v457 = vpop.f32.mrf.mxu0
        %v458 = vadd.f32 %v404, %v457
        %459 = vdwg.mxu0
        %v460 = vmax.f32 %v441, 0.0
        %v461 = vmax.f32 %v443, 0.0
        %v462 = vmax.f32 %v446, 0.0
        %v463 = vmax.f32 %v448, 0.0
        %v464 = vmax.f32 %v451, 0.0
        %v465 = vmax.f32 %v453, 0.0
        %v466 = vmax.f32 %v456, 0.0
        %v467 = vmax.f32 %v458, 0.0
        %v468 = vpack.c.bf16 %v461, %v460
        %v469 = vpack.c.bf16 %v463, %v462
        %v470 = vpack.c.bf16 %v465, %v464
        %v471 = vpack.c.bf16 %v467, %v466
        %v473 = vperm.slane %v388, 0
        %v491 = vunpack.c.l.b16 %v339
        %v492 = vunpack.c.l.b16 %v340
        %v493 = vunpack.c.l.b16 %v341
        %v494 = vunpack.c.l.b16 %v342
        %v495 = vunpack.c.l.b16 %v343
        %v496 = vunpack.c.l.b16 %v344
        %v497 = vunpack.c.l.b16 %v345
        %v498 = vunpack.c.l.b16 %v346
        %v499 = vunpack.c.l.b16 %v347
        %v500 = vunpack.c.l.b16 %v348
        %v501 = vunpack.c.l.b16 %v349
        %v502 = vunpack.c.l.b16 %v350
        %v503 = vunpack.c.l.b16 %v351
        %v504 = vunpack.c.l.b16 %v352
        %v505 = vunpack.c.l.b16 %v353
        %v506 = vunpack.c.l.b16 %v354
        %v507 = vpack.c.b16 %v492, %v491
        %v508 = vpack.c.b16 %v494, %v493
        %v509 = vpack.c.b16 %v496, %v495
        %v510 = vpack.c.b16 %v498, %v497
        %v511 = vpack.c.b16 %v500, %v499
        %v512 = vpack.c.b16 %v502, %v501
        %v513 = vpack.c.b16 %v504, %v503
        %v514 = vpack.c.b16 %v506, %v505
        %523 = vmatpush.bf16.msra.mxu0 %v514
        %524 = vmatpush.bf16.msra.mxu0 %v513
        %525 = vmatpush.bf16.msra.mxu0 %v512
        %526 = vmatpush.bf16.msra.mxu0 %v511
        %527 = vmatpush.bf16.msra.mxu0 %v510
        %528 = vmatpush.bf16.msra.mxu0 %v509
        %529 = vmatpush.bf16.msra.mxu0 %v508
        %530 = vmatpush.bf16.msra.mxu0 %v507
        %531 = vmatmul.bf16.gmra.mxu0 %v468
        %v532 = vpop.f32.mrf.mxu0
        %v533 = vadd.f32 %v473, %v532
        %v534 = vpop.f32.mrf.mxu0
        %v535 = vadd.f32 %v473, %v534
        %536 = vmatmul.bf16.gmra.mxu0 %v469
        %v537 = vpop.f32.mrf.mxu0
        %v538 = vadd.f32 %v473, %v537
        %v539 = vpop.f32.mrf.mxu0
        %v540 = vadd.f32 %v473, %v539
        %541 = vmatmul.bf16.gmra.mxu0 %v470
        %v542 = vpop.f32.mrf.mxu0
        %v543 = vadd.f32 %v473, %v542
        %v544 = vpop.f32.mrf.mxu0
        %v545 = vadd.f32 %v473, %v544
        %546 = vmatmul.bf16.gmra.mxu0 %v471
        %v547 = vpop.f32.mrf.mxu0
        %v548 = vadd.f32 %v473, %v547
        %v549 = vpop.f32.mrf.mxu0
        %v550 = vadd.f32 %v473, %v549
        %551 = vdwg.mxu0
        %v552 = vmax.f32 %v533, 0.0
        %v553 = vmax.f32 %v535, 0.0
        %v554 = vmax.f32 %v538, 0.0
        %v555 = vmax.f32 %v540, 0.0
        %v556 = vmax.f32 %v543, 0.0
        %v557 = vmax.f32 %v545, 0.0
        %v558 = vmax.f32 %v548, 0.0
        %v559 = vmax.f32 %v550, 0.0
        %v560 = vpack.c.bf16 %v553, %v552
        %v561 = vpack.c.bf16 %v555, %v554
        %v562 = vpack.c.bf16 %v557, %v556
        %v563 = vpack.c.bf16 %v559, %v558
        %v565 = vperm.slane %v389, 0
        %v583 = vunpack.c.l.b16 %v355
        %v584 = vunpack.c.l.b16 %v356
        %v585 = vunpack.c.l.b16 %v357
        %v586 = vunpack.c.l.b16 %v358
        %v587 = vunpack.c.l.b16 %v359
        %v588 = vunpack.c.l.b16 %v360
        %v589 = vunpack.c.l.b16 %v361
        %v590 = vunpack.c.l.b16 %v362
        %v591 = vunpack.c.l.b16 %v363
        %v592 = vunpack.c.l.b16 %v364
        %v593 = vunpack.c.l.b16 %v365
        %v594 = vunpack.c.l.b16 %v366
        %v595 = vunpack.c.l.b16 %v367
        %v596 = vunpack.c.l.b16 %v368
        %v597 = vunpack.c.l.b16 %v369
        %v598 = vunpack.c.l.b16 %v370
        %v599 = vpack.c.b16 %v584, %v583
        %v600 = vpack.c.b16 %v586, %v585
        %v601 = vpack.c.b16 %v588, %v587
        %v602 = vpack.c.b16 %v590, %v589
        %v603 = vpack.c.b16 %v592, %v591
        %v604 = vpack.c.b16 %v594, %v593
        %v605 = vpack.c.b16 %v596, %v595
        %v606 = vpack.c.b16 %v598, %v597
        %615 = vmatpush.bf16.msra.mxu0 %v606
        %616 = vmatpush.bf16.msra.mxu0 %v605
        %617 = vmatpush.bf16.msra.mxu0 %v604
        %618 = vmatpush.bf16.msra.mxu0 %v603
        %619 = vmatpush.bf16.msra.mxu0 %v602
        %620 = vmatpush.bf16.msra.mxu0 %v601
        %621 = vmatpush.bf16.msra.mxu0 %v600
        %622 = vmatpush.bf16.msra.mxu0 %v599
        %623 = vmatmul.bf16.gmra.mxu0 %v560
        %v624 = vpop.f32.mrf.mxu0
        %v625 = vadd.f32 %v565, %v624
        %v626 = vpop.f32.mrf.mxu0
        %v627 = vadd.f32 %v565, %v626
        %628 = vmatmul.bf16.gmra.mxu0 %v561
        %v629 = vpop.f32.mrf.mxu0
        %v630 = vadd.f32 %v565, %v629
        %v631 = vpop.f32.mrf.mxu0
        %v632 = vadd.f32 %v565, %v631
        %633 = vmatmul.bf16.gmra.mxu0 %v562
        %v634 = vpop.f32.mrf.mxu0
        %v635 = vadd.f32 %v565, %v634
        %v636 = vpop.f32.mrf.mxu0
        %v637 = vadd.f32 %v565, %v636
        %638 = vmatmul.bf16.gmra.mxu0 %v563
        %v639 = vpop.f32.mrf.mxu0
        %v640 = vadd.f32 %v565, %v639
        %v641 = vpop.f32.mrf.mxu0
        %v642 = vadd.f32 %v565, %v641
        %643 = vdwg.mxu0
        %v644 = vmax.f32 %v625, 0.0
        %v645 = vmax.f32 %v627, 0.0
        %v646 = vmax.f32 %v630, 0.0
        %v647 = vmax.f32 %v632, 0.0
        %v648 = vmax.f32 %v635, 0.0
        %v649 = vmax.f32 %v637, 0.0
        %v650 = vmax.f32 %v640, 0.0
        %v651 = vmax.f32 %v642, 0.0
        %v652 = vpack.c.bf16 %v645, %v644
        %v653 = vpack.c.bf16 %v647, %v646
        %v654 = vpack.c.bf16 %v649, %v648
        %v655 = vpack.c.bf16 %v651, %v650
        %v657 = vperm.slane %v390, 0
        %v675 = vunpack.c.l.b16 %v371
        %v676 = vunpack.c.l.b16 %v372
        %v677 = vunpack.c.l.b16 %v373
        %v678 = vunpack.c.l.b16 %v374
        %v679 = vunpack.c.l.b16 %v375
        %v680 = vunpack.c.l.b16 %v376
        %v681 = vunpack.c.l.b16 %v377
        %v682 = vunpack.c.l.b16 %v378
        %v683 = vunpack.c.l.b16 %v379
        %v684 = vunpack.c.l.b16 %v380
        %v685 = vunpack.c.l.b16 %v381
        %v686 = vunpack.c.l.b16 %v382
        %v687 = vunpack.c.l.b16 %v383
        %v688 = vunpack.c.l.b16 %v384
        %v689 = vunpack.c.l.b16 %v385
        %v690 = vunpack.c.l.b16 %v386
        %v691 = vpack.c.b16 %v676, %v675
        %v692 = vpack.c.b16 %v678, %v677
        %v693 = vpack.c.b16 %v680, %v679
        %v694 = vpack.c.b16 %v682, %v681
        %v695 = vpack.c.b16 %v684, %v683
        %v696 = vpack.c.b16 %v686, %v685
        %v697 = vpack.c.b16 %v688, %v687
        %v698 = vpack.c.b16 %v690, %v689
        %707 = vmatpush.bf16.msra.mxu0 %v698
        %708 = vmatpush.bf16.msra.mxu0 %v697
        %709 = vmatpush.bf16.msra.mxu0 %v696
        %710 = vmatpush.bf16.msra.mxu0 %v695
        %711 = vmatpush.bf16.msra.mxu0 %v694
        %712 = vmatpush.bf16.msra.mxu0 %v693
        %713 = vmatpush.bf16.msra.mxu0 %v692
        %714 = vmatpush.bf16.msra.mxu0 %v691
        %715 = vmatmul.bf16.gmra.mxu0 %v652
        %v716 = vpop.f32.mrf.mxu0
        %v717 = vadd.f32 %v657, %v716
        %v718 = vpop.f32.mrf.mxu0
        %v719 = vadd.f32 %v657, %v718
        %720 = vmatmul.bf16.gmra.mxu0 %v653
        %v721 = vpop.f32.mrf.mxu0
        %v722 = vadd.f32 %v657, %v721
        %v723 = vpop.f32.mrf.mxu0
        %v724 = vadd.f32 %v657, %v723
        %725 = vmatmul.bf16.gmra.mxu0 %v654
        %v726 = vpop.f32.mrf.mxu0
        %v727 = vadd.f32 %v657, %v726
        %v728 = vpop.f32.mrf.mxu0
        %v729 = vadd.f32 %v657, %v728
        %730 = vmatmul.bf16.gmra.mxu0 %v655
        %v731 = vpop.f32.mrf.mxu0
        %v732 = vadd.f32 %v657, %v731
        %v733 = vpop.f32.mrf.mxu0
        %v734 = vadd.f32 %v657, %v733
        %735 = vdwg.mxu0
        %736 = vst [vmem:[%s326] sm:$0xff] %v717
        %737 = vst [vmem:[%s326 + $0x8] sm:$0xff] %v719
        %738 = vst [vmem:[%s326 + $0x10] sm:$0xff] %v722
        %739 = vst [vmem:[%s326 + $0x18] sm:$0xff] %v724
        %740 = vst [vmem:[%s326 + $0x20] sm:$0xff] %v727
        %741 = vst [vmem:[%s326 + $0x28] sm:$0xff] %v729
        %742 = vst [vmem:[%s326 + $0x30] sm:$0xff] %v732
        %743 = vst [vmem:[%s326 + $0x38] sm:$0xff] %v734
        %v744 = vld [vmem:[%s331 + $0x40] sm:$0xff]
        %v745 = vld [vmem:[%s331 + $0x48] sm:$0xff]
        %v746 = vld [vmem:[%s331 + $0x50] sm:$0xff]
        %v747 = vld [vmem:[%s331 + $0x58] sm:$0xff]
        %v748 = vld [vmem:[%s331 + $0x60] sm:$0xff]
        %v749 = vld [vmem:[%s331 + $0x68] sm:$0xff]
        %v750 = vld [vmem:[%s331 + $0x70] sm:$0xff]
        %v751 = vld [vmem:[%s331 + $0x78] sm:$0xff]
        %v752 = vpack.c.bf16 %v745, %v744
        %v753 = vpack.c.bf16 %v747, %v746
        %v754 = vpack.c.bf16 %v749, %v748
        %v755 = vpack.c.bf16 %v751, %v750
        %v757 = vsel %vm418, %v752, 0
        %v760 = vsel %vm418, %v753, 0
        %v763 = vsel %vm418, %v754, 0
        %v766 = vsel %vm418, %v755, 0
        %768 = vmatpush.bf16.msra.mxu0 0
        %769 = vmatpush.bf16.msra.mxu0 0
        %770 = vmatpush.bf16.msra.mxu0 0
        %771 = vmatpush.bf16.msra.mxu0 0
        %772 = vmatpush.bf16.msra.mxu0 0
        %773 = vmatpush.bf16.msra.mxu0 0
        %774 = vmatpush.bf16.msra.mxu0 %v415
        %775 = vmatpush.bf16.msra.mxu0 %v414
        %776 = vmatmul.bf16.gmra.mxu0 %v757
        %v777 = vpop.f32.mrf.mxu0
        %v778 = vadd.f32 %v404, %v777
        %v779 = vpop.f32.mrf.mxu0
        %v780 = vadd.f32 %v404, %v779
        %781 = vmatmul.bf16.gmra.mxu0 %v760
        %v782 = vpop.f32.mrf.mxu0
        %v783 = vadd.f32 %v404, %v782
        %v784 = vpop.f32.mrf.mxu0
        %v785 = vadd.f32 %v404, %v784
        %786 = vmatmul.bf16.gmra.mxu0 %v763
        %v787 = vpop.f32.mrf.mxu0
        %v788 = vadd.f32 %v404, %v787
        %v789 = vpop.f32.mrf.mxu0
        %v790 = vadd.f32 %v404, %v789
        %791 = vmatmul.bf16.gmra.mxu0 %v766
        %v792 = vpop.f32.mrf.mxu0
        %v793 = vadd.f32 %v404, %v792
        %v794 = vpop.f32.mrf.mxu0
        %v795 = vadd.f32 %v404, %v794
        %796 = vdwg.mxu0
        %v797 = vmax.f32 %v778, 0.0
        %v798 = vmax.f32 %v780, 0.0
        %v799 = vmax.f32 %v783, 0.0
        %v800 = vmax.f32 %v785, 0.0
        %v801 = vmax.f32 %v788, 0.0
        %v802 = vmax.f32 %v790, 0.0
        %v803 = vmax.f32 %v793, 0.0
        %v804 = vmax.f32 %v795, 0.0
        %v805 = vpack.c.bf16 %v798, %v797
        %v806 = vpack.c.bf16 %v800, %v799
        %v807 = vpack.c.bf16 %v802, %v801
        %v808 = vpack.c.bf16 %v804, %v803
        %809 = vmatpush.bf16.msra.mxu0 %v514
        %810 = vmatpush.bf16.msra.mxu0 %v513
        %811 = vmatpush.bf16.msra.mxu0 %v512
        %812 = vmatpush.bf16.msra.mxu0 %v511
        %813 = vmatpush.bf16.msra.mxu0 %v510
        %814 = vmatpush.bf16.msra.mxu0 %v509
        %815 = vmatpush.bf16.msra.mxu0 %v508
        %816 = vmatpush.bf16.msra.mxu0 %v507
        %817 = vmatmul.bf16.gmra.mxu0 %v805
        %v818 = vpop.f32.mrf.mxu0
        %v819 = vadd.f32 %v473, %v818
        %v820 = vpop.f32.mrf.mxu0
        %v821 = vadd.f32 %v473, %v820
        %822 = vmatmul.bf16.gmra.mxu0 %v806
        %v823 = vpop.f32.mrf.mxu0
        %v824 = vadd.f32 %v473, %v823
        %v825 = vpop.f32.mrf.mxu0
        %v826 = vadd.f32 %v473, %v825
        %827 = vmatmul.bf16.gmra.mxu0 %v807
        %v828 = vpop.f32.mrf.mxu0
        %v829 = vadd.f32 %v473, %v828
        %v830 = vpop.f32.mrf.mxu0
        %v831 = vadd.f32 %v473, %v830
        %832 = vmatmul.bf16.gmra.mxu0 %v808
        %v833 = vpop.f32.mrf.mxu0
        %v834 = vadd.f32 %v473, %v833
        %v835 = vpop.f32.mrf.mxu0
        %v836 = vadd.f32 %v473, %v835
        %837 = vdwg.mxu0
        %v838 = vmax.f32 %v819, 0.0
        %v839 = vmax.f32 %v821, 0.0
        %v840 = vmax.f32 %v824, 0.0
        %v841 = vmax.f32 %v826, 0.0
        %v842 = vmax.f32 %v829, 0.0
        %v843 = vmax.f32 %v831, 0.0
        %v844 = vmax.f32 %v834, 0.0
        %v845 = vmax.f32 %v836, 0.0
        %v846 = vpack.c.bf16 %v839, %v838
        %v847 = vpack.c.bf16 %v841, %v840
        %v848 = vpack.c.bf16 %v843, %v842
        %v849 = vpack.c.bf16 %v845, %v844
        %850 = vmatpush.bf16.msra.mxu0 %v606
        %851 = vmatpush.bf16.msra.mxu0 %v605
        %852 = vmatpush.bf16.msra.mxu0 %v604
        %853 = vmatpush.bf16.msra.mxu0 %v603
        %854 = vmatpush.bf16.msra.mxu0 %v602
        %855 = vmatpush.bf16.msra.mxu0 %v601
        %856 = vmatpush.bf16.msra.mxu0 %v600
        %857 = vmatpush.bf16.msra.mxu0 %v599
        %858 = vmatmul.bf16.gmra.mxu0 %v846
        %v859 = vpop.f32.mrf.mxu0
        %v860 = vadd.f32 %v565, %v859
        %v861 = vpop.f32.mrf.mxu0
        %v862 = vadd.f32 %v565, %v861
        %863 = vmatmul.bf16.gmra.mxu0 %v847
        %v864 = vpop.f32.mrf.mxu0
        %v865 = vadd.f32 %v565, %v864
        %v866 = vpop.f32.mrf.mxu0
        %v867 = vadd.f32 %v565, %v866
        %868 = vmatmul.bf16.gmra.mxu0 %v848
        %v869 = vpop.f32.mrf.mxu0
        %v870 = vadd.f32 %v565, %v869
        %v871 = vpop.f32.mrf.mxu0
        %v872 = vadd.f32 %v565, %v871
        %873 = vmatmul.bf16.gmra.mxu0 %v849
        %v874 = vpop.f32.mrf.mxu0
        %v875 = vadd.f32 %v565, %v874
        %v876 = vpop.f32.mrf.mxu0
        %v877 = vadd.f32 %v565, %v876
        %878 = vdwg.mxu0
        %v879 = vmax.f32 %v860, 0.0
        %v880 = vmax.f32 %v862, 0.0
        %v881 = vmax.f32 %v865, 0.0
        %v882 = vmax.f32 %v867, 0.0
        %v883 = vmax.f32 %v870, 0.0
        %v884 = vmax.f32 %v872, 0.0
        %v885 = vmax.f32 %v875, 0.0
        %v886 = vmax.f32 %v877, 0.0
        %v887 = vpack.c.bf16 %v880, %v879
        %v888 = vpack.c.bf16 %v882, %v881
        %v889 = vpack.c.bf16 %v884, %v883
        %v890 = vpack.c.bf16 %v886, %v885
        %891 = vmatpush.bf16.msra.mxu0 %v698
        %892 = vmatpush.bf16.msra.mxu0 %v697
        %893 = vmatpush.bf16.msra.mxu0 %v696
        %894 = vmatpush.bf16.msra.mxu0 %v695
        %895 = vmatpush.bf16.msra.mxu0 %v694
        %896 = vmatpush.bf16.msra.mxu0 %v693
        %897 = vmatpush.bf16.msra.mxu0 %v692
        %898 = vmatpush.bf16.msra.mxu0 %v691
        %899 = vmatmul.bf16.gmra.mxu0 %v887
        %v900 = vpop.f32.mrf.mxu0
        %v901 = vadd.f32 %v657, %v900
        %v902 = vpop.f32.mrf.mxu0
        %v903 = vadd.f32 %v657, %v902
        %904 = vmatmul.bf16.gmra.mxu0 %v888
        %v905 = vpop.f32.mrf.mxu0
        %v906 = vadd.f32 %v657, %v905
        %v907 = vpop.f32.mrf.mxu0
        %v908 = vadd.f32 %v657, %v907
        %909 = vmatmul.bf16.gmra.mxu0 %v889
        %v910 = vpop.f32.mrf.mxu0
        %v911 = vadd.f32 %v657, %v910
        %v912 = vpop.f32.mrf.mxu0
        %v913 = vadd.f32 %v657, %v912
        %914 = vmatmul.bf16.gmra.mxu0 %v890
        %v915 = vpop.f32.mrf.mxu0
        %v916 = vadd.f32 %v657, %v915
        %v917 = vpop.f32.mrf.mxu0
        %v918 = vadd.f32 %v657, %v917
        %919 = vdwg.mxu0
        %920 = vst [vmem:[%s326 + $0x40] sm:$0xff] %v901
        %921 = vst [vmem:[%s326 + $0x48] sm:$0xff] %v903
        %922 = vst [vmem:[%s326 + $0x50] sm:$0xff] %v906
        %923 = vst [vmem:[%s326 + $0x58] sm:$0xff] %v908
        %924 = vst [vmem:[%s326 + $0x60] sm:$0xff] %v911
        %925 = vst [vmem:[%s326 + $0x68] sm:$0xff] %v913
        %926 = vst [vmem:[%s326 + $0x70] sm:$0xff] %v916
        %927 = vst [vmem:[%s326 + $0x78] sm:$0xff] %v918
        %s928 = sand.u32 %s225, 1
        %s929 = scalar_lea.sflag [#allocation3], %s928
        %s930 = sand.u32 %s225, 1
        %s931 = smul.addr %s930, 128
        %s932 = scalar_lea.vmem [#allocation2], %s931
        // Predicated region
        $region57: #{tpu_custom_call.1} parent=55 // pred_check
          %p933 = pneg %p235
        $region58: #{tpu_custom_call.1} parent=55 // pred_check_branch
          %935 = sbr.rel (%p933) target = $region60
        $region59: #{tpu_custom_call.1} parent=55 // pred_region
          %s936 = smul.u32 16, %s23
          %938 = vsyncadd %s929, 0
          %s939 = smul.addr %s936, 8
          %s940 = scalar_lea.hbm %s9, %s939
          %s941 = sshll.u32 %s932, 4
          %s942 = int_to_ptr.vmem [resolvable:$true] %s941
          %s943 = sshll.u32 %s940, 4
          %s944 = int_to_ptr.hbm [resolvable:$true] %s943
          %949 = dma.vmem_to_hbm [thread:$0]  %s942, 2048, %s944, %s929, 128, 128, 8
        $region60: #{tpu_custom_call.1} parent=55 // pred_fallthru
          _
      $region56: #{tpu_custom_call.1} parent=5 // pred_fallthru
        _
      %p950 = scmp.le.s32.totalorder 2, %s18
      // Predicated region
      $region61: #{tpu_custom_call.1} parent=5 // pred_check
        %p951 = pneg %p950
      $region62: #{tpu_custom_call.1} parent=5 // pred_check_branch
        %953 = sbr.rel (%p951) target = $region64
      $region63: #{tpu_custom_call.1} parent=5 // pred_region
        %s954 = ssub.s32 %s18, 2
        // Predicated region
        $region65: #{tpu_custom_call.1} parent=63 // pred_check
          %p955 = pneg %p241
        $region66: #{tpu_custom_call.1} parent=63 // pred_check_branch
          %957 = sbr.rel (%p955) target = $region68
        $region67: #{tpu_custom_call.1} parent=63 // pred_region
          %s958 = sand.u32 %s226, 1
          %s959 = scalar_lea.sflag [#allocation3], %s958
          %s960 = sand.u32 %s226, 1
          %s961 = smul.addr %s960, 128
          %s962 = scalar_lea.vmem [#allocation2], %s961
          %964 = dma.done %s959, 2048
        $region68: #{tpu_custom_call.1} parent=63 // pred_fallthru
          _
      $region64: #{tpu_custom_call.1} parent=5 // pred_fallthru
        _
    $region6: #{tpu_custom_call.1} parent=1 // loop_footer
      %s22 = sadd.s32 1, %s18
    $region7: #{tpu_custom_call.1} parent=1 // loop_footer_branch
      %17 = sbr.rel target = $region3
    $region8: #{tpu_custom_call.1} parent=1 // loop_exit
      _
    %965 = vsyncpa [#allocation3], 1
    %s966 = scalar_lea.sflag [#allocation3], 1
    %967 = vsyncpa %s966, 1

</llo_original>
